<compile_context>
chip_gen: v6e
topology: v6e:2x2x1
jax: 0.10.0
libtpu: 0.0.40
codegen_flags: <defaults>
</compile_context>

<pallas_src>
import math

import jax
import jax.numpy as jnp
from jax.experimental import pallas as pl
from jax.experimental.pallas import tpu as pltpu

_HALF_LOG_PI = 0.5 * math.log(math.pi)


def _student_t_mixture_loss_kernel(loc_ref, a_ref, coef_ref, const_ref,
                                   util_ref, out_ref):
    loc = loc_ref[...]      # (TB, K)
    a = a_ref[...]          # (TB, K)   = 1 / (df * scale^2)
    coef = coef_ref[...]    # (TB, K)   = -0.5 * (df + 1)
    const = const_ref[...]  # (TB, K)   = log_softmax(logits) - S * log_norm
    u = util_ref[...]       # (TB, S)

    # Fused (TB, K, S) hot path: one log1p per element, no per-element
    # divides, and the 3D value feeds straight into the S-reduction.
    sum_t = jnp.sum(
        jnp.log1p(jnp.square(u[:, None, :] - loc[:, :, None]) * a[:, :, None]),
        axis=-1)                                                    # (TB, K)

    # Mixture log-prob: logsumexp over the K components.
    lw = coef * sum_t + const                                       # (TB, K)
    m = jnp.max(lw, axis=-1, keepdims=True)                         # (TB, 1)
    log_p = m + jnp.log(jnp.sum(jnp.exp(lw - m), axis=-1, keepdims=True))

    # Lane-dense store of per-row log_p (wrapper reads column 0).
    out_ref[...] = jnp.broadcast_to(log_p, out_ref.shape)


def student_t_mixture_loss(df, loc, utilities, scale, logits, *, tile_b=None):
    B, K = loc.shape
    S = utilities.shape[-1]

    # Per-(B,K) precomputation (cheap glue outside the hot (B,K,S) path).
    # TODO(synk): inputs are assumed pre-validated (df > 0, scale > 0), same as
    # the torch module (no guards; nonpositive values produce NaN either way).
    lg = jax.lax.lgamma(0.5 * df) - jax.lax.lgamma(0.5 * (df + 1.0))
    log_norm = jnp.log(scale) + 0.5 * jnp.log(df) + _HALF_LOG_PI + lg
    coef = -0.5 * (df + 1.0)
    const = jax.nn.log_softmax(logits, axis=-1) - S * log_norm
    a = 1.0 / (df * scale * scale)   # ((u-loc)^2) * a == ((u-loc)/scale)^2 / df

    # Batch-tile selection: ~4 MiB budget for one (tile_b, K, S) f32 value so
    # a few live copies plus double-buffered input tiles fit scoped VMEM on
    # every generation (v5e 16 MiB default, v6e/v7x 32 MiB).
    if tile_b is None:
        tile_b = max(8, (4 * 1024 * 1024) // (K * S * 4))
    if tile_b >= B:
        tile_b = B                            # single tile: block == full array
    else:
        tile_b = max(8, (tile_b // 8) * 8)    # sublane alignment when tiling
    n_tiles = pl.cdiv(B, tile_b)
    Bp = n_tiles * tile_b

    if Bp != B:
        pad = ((0, Bp - B), (0, 0))
        loc_p, a_p = jnp.pad(loc, pad), jnp.pad(a, pad)
        coef_p, const_p = jnp.pad(coef, pad), jnp.pad(const, pad)
        util_p = jnp.pad(utilities, pad)      # padded rows masked by the slice
    else:
        loc_p, a_p, coef_p, const_p, util_p = loc, a, coef, const, utilities

    bk_spec = pl.BlockSpec((tile_b, K), lambda i: (i, 0))
    out = pl.pallas_call(
        _student_t_mixture_loss_kernel,
        out_shape=jax.ShapeDtypeStruct((Bp, 128), jnp.float32),
        grid=(n_tiles,),
        in_specs=[
            bk_spec,                                       # loc
            bk_spec,                                       # a
            bk_spec,                                       # coef
            bk_spec,                                       # const
            pl.BlockSpec((tile_b, S), lambda i: (i, 0)),   # utilities
        ],
        out_specs=pl.BlockSpec((tile_b, 128), lambda i: (i, 0)),
        compiler_params=pltpu.CompilerParams(
            dimension_semantics=("parallel",),
            vmem_limit_bytes=32 * 1024 * 1024),
    )(loc_p, a_p, coef_p, const_p, util_p)

    log_p = out[:B, 0]                                     # (B,)
    return -jnp.mean(log_p) / S


def _reference_loss(df, loc, utilities, scale, logits):
    """Pure-JAX reference mirroring torch.distributions math."""
    S = utilities.shape[-1]
    y = (utilities[:, None, :] - loc[:, :, None]) / scale[:, :, None]
    t = jnp.log1p((y * y) / df[:, :, None])
    Z = (jnp.log(scale) + 0.5 * jnp.log(df) + _HALF_LOG_PI
         + jax.lax.lgamma(0.5 * df) - jax.lax.lgamma(0.5 * (df + 1.0)))
    comp_logp = -0.5 * (df + 1.0) * jnp.sum(t, axis=-1) - S * Z
    log_mix = jax.nn.log_softmax(logits, axis=-1)
    log_p = jax.scipy.special.logsumexp(comp_logp + log_mix, axis=-1)
    return (-jnp.mean(log_p)) / S


if __name__ == "__main__":
    def make_inputs(key, B, K, S):
        k1, k2, k3, k4, k5 = jax.random.split(key, 5)
        df = 2.0 + jax.nn.softplus(jax.random.normal(k1, (B, K), jnp.float32))
        loc = jax.random.normal(k2, (B, K), jnp.float32)
        scale = 0.5 + jax.nn.softplus(jax.random.normal(k3, (B, K), jnp.float32))
        logits = jax.random.normal(k4, (B, K), jnp.float32)
        utilities = jax.random.normal(k5, (B, S), jnp.float32)
        return df, loc, utilities, scale, logits

    # Small shape consistent with the module (single-tile path).
    B, K, S = 2, 16, 128
    df, loc, utilities, scale, logits = make_inputs(jax.random.PRNGKey(0), B, K, S)
    loss = student_t_mixture_loss(df, loc, utilities, scale, logits)
    jax.block_until_ready(loss)
    ref = _reference_loss(df, loc, utilities, scale, logits)
    assert jnp.allclose(loss, ref, rtol=1e-3, atol=1e-3), (loss, ref)

    # Exercise the tiled + padded grid path (3 tiles of 8 rows covering B=20).
    df2, loc2, util2, scale2, logits2 = make_inputs(jax.random.PRNGKey(1), 20, K, S)
    loss2 = student_t_mixture_loss(df2, loc2, util2, scale2, logits2, tile_b=8)
    jax.block_until_ready(loss2)
    ref2 = _reference_loss(df2, loc2, util2, scale2, logits2)
    assert jnp.allclose(loss2, ref2, rtol=1e-3, atol=1e-3), (loss2, ref2)

    print("KERNEL_OK")
</pallas_src>

<mosaic_0001>
module attributes {stable_mosaic.version = 11 : i64} {
  func.func @_student_t_mixture_loss_kernel(%arg0: i32, %arg1: memref<2x16xf32, #tpu.memory_space<vmem>>, %arg2: memref<2x16xf32, #tpu.memory_space<vmem>>, %arg3: memref<2x16xf32, #tpu.memory_space<vmem>>, %arg4: memref<2x16xf32, #tpu.memory_space<vmem>>, %arg5: memref<2x128xf32, #tpu.memory_space<vmem>>, %arg6: memref<2x128xf32, #tpu.memory_space<vmem>>) attributes {dimension_semantics = [#tpu.dimension_semantics<parallel>], iteration_bounds = array<i64: 1>, scalar_prefetch = 0 : i64, scratch_operands = 0 : i64, tpu.core_type = #tpu.core_type<tc>, window_params = [{transform_indices = @transform_0, window_bounds = array<i64: 2, 16>}, {transform_indices = @transform_1, window_bounds = array<i64: 2, 16>}, {transform_indices = @transform_2, window_bounds = array<i64: 2, 16>}, {transform_indices = @transform_3, window_bounds = array<i64: 2, 16>}, {transform_indices = @transform_4, window_bounds = array<i64: 2, 128>}, {transform_indices = @transform_5, window_bounds = array<i64: 2, 128>}]} {
    %c0 = arith.constant 0 : index
    %c0_0 = arith.constant 0 : index
    %0 = vector.load %arg1[%c0, %c0_0] : memref<2x16xf32, #tpu.memory_space<vmem>>, vector<2x16xf32>
    %c0_1 = arith.constant 0 : index
    %c0_2 = arith.constant 0 : index
    %1 = vector.load %arg2[%c0_1, %c0_2] : memref<2x16xf32, #tpu.memory_space<vmem>>, vector<2x16xf32>
    %c0_3 = arith.constant 0 : index
    %c0_4 = arith.constant 0 : index
    %2 = vector.load %arg3[%c0_3, %c0_4] : memref<2x16xf32, #tpu.memory_space<vmem>>, vector<2x16xf32>
    %c0_5 = arith.constant 0 : index
    %c0_6 = arith.constant 0 : index
    %3 = vector.load %arg4[%c0_5, %c0_6] : memref<2x16xf32, #tpu.memory_space<vmem>>, vector<2x16xf32>
    %c0_7 = arith.constant 0 : index
    %c0_8 = arith.constant 0 : index
    %4 = vector.load %arg5[%c0_7, %c0_8] : memref<2x128xf32, #tpu.memory_space<vmem>>, vector<2x128xf32>
    %5 = vector.shape_cast %4 : vector<2x128xf32> to vector<2x1x128xf32>
    %6 = vector.shape_cast %0 : vector<2x16xf32> to vector<2x16x1xf32>
    %7 = vector.broadcast %5 : vector<2x1x128xf32> to vector<2x16x128xf32>
    %8 = vector.broadcast %6 : vector<2x16x1xf32> to vector<2x16x128xf32>
    %9 = arith.subf %7, %8 : vector<2x16x128xf32>
    %10 = arith.mulf %9, %9 : vector<2x16x128xf32>
    %11 = vector.shape_cast %1 : vector<2x16xf32> to vector<2x16x1xf32>
    %12 = vector.broadcast %11 : vector<2x16x1xf32> to vector<2x16x128xf32>
    %13 = arith.mulf %10, %12 : vector<2x16x128xf32>
    %14 = math.log1p %13 : vector<2x16x128xf32>
    %cst = arith.constant dense<0.000000e+00> : vector<2x16xf32>
    %15 = vector.multi_reduction <add>, %14, %cst [2] : vector<2x16x128xf32> to vector<2x16xf32>
    %16 = arith.mulf %2, %15 : vector<2x16xf32>
    %17 = arith.addf %16, %3 : vector<2x16xf32>
    %cst_9 = arith.constant dense<0xFF800000> : vector<2xf32>
    %18 = vector.multi_reduction <maximumf>, %17, %cst_9 [1] : vector<2x16xf32> to vector<2xf32>
    %19 = vector.shape_cast %18 : vector<2xf32> to vector<2x1xf32>
    %20 = vector.broadcast %19 : vector<2x1xf32> to vector<2x16xf32>
    %21 = arith.subf %17, %20 : vector<2x16xf32>
    %22 = math.exp %21 : vector<2x16xf32>
    %cst_10 = arith.constant dense<0.000000e+00> : vector<2xf32>
    %23 = vector.multi_reduction <add>, %22, %cst_10 [1] : vector<2x16xf32> to vector<2xf32>
    %24 = vector.shape_cast %23 : vector<2xf32> to vector<2x1xf32>
    %25 = math.log %24 : vector<2x1xf32>
    %26 = arith.addf %19, %25 : vector<2x1xf32>
    %27 = vector.shape_cast %26 : vector<2x1xf32> to vector<2x1xf32>
    %28 = vector.broadcast %27 : vector<2x1xf32> to vector<2x128xf32>
    %c0_11 = arith.constant 0 : index
    %c0_12 = arith.constant 0 : index
    %29 = vector.load %arg6[%c0_11, %c0_12] : memref<2x128xf32, #tpu.memory_space<vmem>>, vector<2x128xf32>
    tpu.vector_store %arg6[%c0_11, %c0_12], %28 {strides = array<i32>} : memref<2x128xf32, #tpu.memory_space<vmem>>, vector<2x128xf32>,
    return
  }
  func.func @transform_0(%arg0: i32) -> (i32, i32) {
    %c0_i32 = arith.constant 0 : i32
    %c0_i32_0 = arith.constant 0 : i32
    return %arg0, %c0_i32 : i32, i32
  }
  func.func @transform_1(%arg0: i32) -> (i32, i32) {
    %c0_i32 = arith.constant 0 : i32
    %c0_i32_0 = arith.constant 0 : i32
    return %arg0, %c0_i32 : i32, i32
  }
  func.func @transform_2(%arg0: i32) -> (i32, i32) {
    %c0_i32 = arith.constant 0 : i32
    %c0_i32_0 = arith.constant 0 : i32
    return %arg0, %c0_i32 : i32, i32
  }
  func.func @transform_3(%arg0: i32) -> (i32, i32) {
    %c0_i32 = arith.constant 0 : i32
    %c0_i32_0 = arith.constant 0 : i32
    return %arg0, %c0_i32 : i32, i32
  }
  func.func @transform_4(%arg0: i32) -> (i32, i32) {
    %c0_i32 = arith.constant 0 : i32
    %c0_i32_0 = arith.constant 0 : i32
    return %arg0, %c0_i32 : i32, i32
  }
  func.func @transform_5(%arg0: i32) -> (i32, i32) {
    %c0_i32 = arith.constant 0 : i32
    %c0_i32_0 = arith.constant 0 : i32
    return %arg0, %c0_i32 : i32, i32
  }
}

</mosaic_0001>

<llo_original>
// kernel: tpu_custom_call.1
$region0: #{tpu_custom_call.1}
  #allocation0 [shape = 'u32[]', space=smem, size = 0x4, offset = 0x4, fixed_abs, tag = 'smem constant byte address 0x4 - core index']
  #allocation1 [shape = 'u32[144,128]{1,0:T(1,128)}', space=vmem, size = 0x12000, scoped, tag = 'internal scratch']
  %s0 = inlined_call_operand.hbm [shape: f32[2,16], index: 0, kind: input, shape index: {}]
  %s1 = inlined_call_operand.hbm [shape: f32[2,16], index: 1, kind: input, shape index: {}]
  %s2 = inlined_call_operand.vmem [shape: f32[2,16], index: 2, kind: input, shape index: {}]
  %s3 = inlined_call_operand.vmem [shape: f32[2,16], index: 3, kind: input, shape index: {}]
  %s4 = inlined_call_operand.vmem [shape: f32[2,128], index: 4, kind: input, shape index: {}]
  %s5 = inlined_call_operand.hbm [shape: f32[2,128], index: 5, kind: output, shape index: {}]
  %s6 = sld [smem:[#allocation0]]
  $region38: #{tpu_custom_call.1} parent=0
    _
  %s8 = ssub.s32 1, %s6
  %s9 = scalar_select 0, %s8, %s6
  $region1: #{tpu_custom_call.1} parent=0
    #allocation2 [shape = 'u8[1024]{0}', space=vmem, size = 0x400, scoped, tag = 'input window, operand 0, single buffered']
    #allocation3 [shape = 's32[1]{0}', space=sflag, size = 0x4, scoped, tag = 'scoped memory for tpu_custom_call.1']
    #allocation4 [shape = 's32[1]{0}', space=sflag, size = 0x4, scoped, tag = 'scoped memory for tpu_custom_call.1']
    #allocation5 [shape = 'u8[1024]{0}', space=vmem, size = 0x400, scoped, tag = 'input window, operand 1, single buffered']
    #allocation6 [shape = 's32[1]{0}', space=sflag, size = 0x4, scoped, tag = 'scoped memory for tpu_custom_call.1']
    #allocation7 [shape = 'u8[1024]{0}', space=vmem, size = 0x400, scoped, tag = 'output window, operand 0, single buffered']
    %10 = vsyncpa [#allocation3], 0
    %11 = vsyncpa [#allocation6], 0
    %12 = vsyncpa [#allocation4], 0
    // Predicated region
    $region2: #{tpu_custom_call.1} parent=1 // pred_check
      _
    $region3: #{tpu_custom_call.1} parent=1 // pred_check_branch
      %14 = sbr.rel (0) target = $region5
    $region4: #{tpu_custom_call.1} parent=1 // pred_region
      %s16 = ssub.s32 32, 32
      %17 = vsyncadd [#allocation3], %s16
      %s19 = sshll.u32 [#allocation2], 4
      %s20 = int_to_ptr.vmem [resolvable:$true] %s19
      %22 = dma.hbm_to_vmem [thread:$0]  %s0, 32, %s20, [#allocation3]
    $region5: #{tpu_custom_call.1} parent=1 // pred_fallthru
      _
    // Predicated region
    $region6: #{tpu_custom_call.1} parent=1 // pred_check
      _
    $region7: #{tpu_custom_call.1} parent=1 // pred_check_branch
      %24 = sbr.rel (0) target = $region9
    $region8: #{tpu_custom_call.1} parent=1 // pred_region
      %s26 = ssub.s32 32, 32
      %27 = vsyncadd [#allocation6], %s26
      %s29 = sshll.u32 [#allocation5], 4
      %s30 = int_to_ptr.vmem [resolvable:$true] %s29
      %32 = dma.hbm_to_vmem [thread:$0]  %s1, 32, %s30, [#allocation6]
    $region9: #{tpu_custom_call.1} parent=1 // pred_fallthru
      _
    // Predicated region
    $region10: #{tpu_custom_call.1} parent=1 // pred_check
      _
    $region11: #{tpu_custom_call.1} parent=1 // pred_check_branch
      %34 = sbr.rel (0) target = $region13
    $region12: #{tpu_custom_call.1} parent=1 // pred_region
      _
    $region13: #{tpu_custom_call.1} parent=1 // pred_fallthru
      _
    // Predicated region
    $region14: #{tpu_custom_call.1} parent=1 // pred_check
      _
    $region15: #{tpu_custom_call.1} parent=1 // pred_check_branch
      %36 = sbr.rel (0) target = $region17
    $region16: #{tpu_custom_call.1} parent=1 // pred_region
      _
    $region17: #{tpu_custom_call.1} parent=1 // pred_fallthru
      _
    // Predicated region
    $region18: #{tpu_custom_call.1} parent=1 // pred_check
      _
    $region19: #{tpu_custom_call.1} parent=1 // pred_check_branch
      %38 = sbr.rel (0) target = $region21
    $region20: #{tpu_custom_call.1} parent=1 // pred_region
      _
    $region21: #{tpu_custom_call.1} parent=1 // pred_fallthru
      _
    // Predicated region
    $region22: #{tpu_custom_call.1} parent=1 // pred_check
      _
    $region23: #{tpu_custom_call.1} parent=1 // pred_check_branch
      %40 = sbr.rel (0) target = $region25
    $region24: #{tpu_custom_call.1} parent=1 // pred_region
      %41 = dma.done [#allocation3], 32
    $region25: #{tpu_custom_call.1} parent=1 // pred_fallthru
      _
    // Predicated region
    $region26: #{tpu_custom_call.1} parent=1 // pred_check
      _
    $region27: #{tpu_custom_call.1} parent=1 // pred_check_branch
      %43 = sbr.rel (0) target = $region29
    $region28: #{tpu_custom_call.1} parent=1 // pred_region
      %44 = dma.done [#allocation6], 32
    $region29: #{tpu_custom_call.1} parent=1 // pred_fallthru
      _
    %v45 = vld [vmem:[#allocation2] sm:$0x3]
    %v46 = vld [vmem:[#allocation5] sm:$0x3]
    %v47 = vld [vmem:[%s2] sm:$0x3]
    %v48 = vld [vmem:[%s3] sm:$0x3]
    %v49 = vld [vmem:[%s4] sm:$0x3]
    %v52 = vunpack.c.l.s4 1966171168
    %v53 = vunpack.c.0.s8 %v52
    %v54 = vlaneseq
    %v55 = vshrl.u32 %v54, 7
    %v56 = vsub.s32 %v53, %v55
    %v57 = vrot.slane %v49, %v56
    %v58 = vcombine.high %v57, %v57
    %v60 = vunpack.c.l.s4 1966171168
    %v61 = vunpack.c.0.s8 %v60
    %v62 = vlaneseq
    %v63 = vshrl.u32 %v62, 7
    %v64 = vsub.s32 %v61, %v63
    %v65 = vrot.slane %v57, %v64
    %v67 = vunpack.c.l.s4 1966171168
    %v68 = vunpack.c.0.s8 %v67
    %v69 = vlaneseq
    %v70 = vshrl.u32 %v69, 7
    %v71 = vsub.s32 %v68, %v70
    %v72 = vrot.slane %v58, %v71
    %v73 = vlaneseq
    %v74 = vshrl.u32 %v73, 7
    %v75 = vsub.s32 0, %v74
    %v76 = vrot.slane %v45, %v75
    %78 = vbcast.lane.b32.xlu0 %v76, 256
    %v79 = vpop.permute.xlu0 %78
    %s81 = sor.u32 256, 8
    %82 = vbcast.lane.b32.xlu0 %v76, %s81
    %v83 = vpop.permute.xlu0 %82
    %v84 = vlaneseq
    %v85 = vshrl.u32 %v84, 7
    %v86 = vsub.s32 1, %v85
    %v87 = vrot.slane %v45, %v86
    %89 = vbcast.lane.b32.xlu0 %v87, 256
    %v90 = vpop.permute.xlu0 %89
    %s92 = sor.u32 256, 8
    %93 = vbcast.lane.b32.xlu0 %v87, %s92
    %v94 = vpop.permute.xlu0 %93
    %v95 = vlaneseq
    %v96 = vshrl.u32 %v95, 7
    %v97 = vsub.s32 0, %v96
    %v98 = vrot.slane %v65, %v97
    %v99 = vlaneseq
    %v100 = vshrl.u32 %v99, 7
    %v101 = vsub.s32 0, %v100
    %v102 = vrot.slane %v72, %v101
    %v105 = vsub.f32 %v98, %v79
    %v106 = vsub.f32 %v98, %v83
    %v107 = vsub.f32 %v102, %v90
    %v108 = vsub.f32 %v102, %v94
    %v109 = vmul.f32 %v105, %v105
    %v110 = vmul.f32 %v106, %v106
    %v111 = vmul.f32 %v107, %v107
    %v112 = vmul.f32 %v108, %v108
    %v113 = vlaneseq
    %v114 = vshrl.u32 %v113, 7
    %v115 = vsub.s32 0, %v114
    %v116 = vrot.slane %v46, %v115
    %118 = vbcast.lane.b32.xlu0 %v116, 256
    %v119 = vpop.permute.xlu0 %118
    %s121 = sor.u32 256, 8
    %122 = vbcast.lane.b32.xlu0 %v116, %s121
    %v123 = vpop.permute.xlu0 %122
    %v124 = vlaneseq
    %v125 = vshrl.u32 %v124, 7
    %v126 = vsub.s32 1, %v125
    %v127 = vrot.slane %v46, %v126
    %129 = vbcast.lane.b32.xlu0 %v127, 256
    %v130 = vpop.permute.xlu0 %129
    %s132 = sor.u32 256, 8
    %133 = vbcast.lane.b32.xlu0 %v127, %s132
    %v134 = vpop.permute.xlu0 %133
    %v135 = vmul.f32 %v109, %v119
    %v136 = vmul.f32 %v110, %v123
    %v137 = vmul.f32 %v111, %v130
    %v138 = vmul.f32 %v112, %v134
    %v139 = vadd.f32 %v135, 1.0
    %v140 = vlog2.pop %v139
    %v141 = vmul.f32 %v140, 0.6931472
    %v142 = vmul.f32 -0.5, %v135
    %v143 = vadd.f32 %v142, 1.0
    %v144 = vmul.f32 %v143, %v135
    %v145 = vand.u32 2147483647, %v135
    %vm146 = vcmp.lt.f32.partialorder %v145, 0.0004427343
    %v147 = vsel %vm146, %v144, %v141
    %v148 = vadd.f32 %v136, 1.0
    %v149 = vlog2.pop %v148
    %v150 = vmul.f32 %v149, 0.6931472
    %v151 = vmul.f32 -0.5, %v136
    %v152 = vadd.f32 %v151, 1.0
    %v153 = vmul.f32 %v152, %v136
    %v154 = vand.u32 2147483647, %v136
    %vm155 = vcmp.lt.f32.partialorder %v154, 0.0004427343
    %v156 = vsel %vm155, %v153, %v150
    %v157 = vadd.f32 %v137, 1.0
    %v158 = vlog2.pop %v157
    %v159 = vmul.f32 %v158, 0.6931472
    %v160 = vmul.f32 -0.5, %v137
    %v161 = vadd.f32 %v160, 1.0
    %v162 = vmul.f32 %v161, %v137
    %v163 = vand.u32 2147483647, %v137
    %vm164 = vcmp.lt.f32.partialorder %v163, 0.0004427343
    %v165 = vsel %vm164, %v162, %v159
    %v166 = vadd.f32 %v138, 1.0
    %v167 = vlog2.pop %v166
    %v168 = vmul.f32 %v167, 0.6931472
    %v169 = vmul.f32 -0.5, %v138
    %v170 = vadd.f32 %v169, 1.0
    %v171 = vmul.f32 %v170, %v138
    %v172 = vand.u32 2147483647, %v138
    %vm173 = vcmp.lt.f32.partialorder %v172, 0.0004427343
    %v174 = vsel %vm173, %v171, %v168
    %175 = vadd.xlane.f32.xlu0 %v147
    %v176 = vpop.xlane.xlu0 %175
    %177 = vadd.xlane.f32.xlu0 %v156
    %v178 = vpop.xlane.xlu0 %177
    %179 = vadd.xlane.f32.xlu0 %v165
    %v180 = vpop.xlane.xlu0 %179
    %181 = vadd.xlane.f32.xlu0 %v174
    %v182 = vpop.xlane.xlu0 %181
    %v187 = vlaneseq
    %v188 = vand.u32 %v187, 127
    %v189 = vlaneseq
    %v190 = vshrl.u32 %v189, 7
    %v191 = vsub.s32 %v188, %v190
    %v192 = vrot.slane %v176, %v191
    %v193 = vadd.s32 %v188, 4294967288
    %v194 = vlaneseq
    %v195 = vshrl.u32 %v194, 7
    %v196 = vsub.s32 %v193, %v195
    %v197 = vrot.slane %v178, %v196
    %vm198 = vcmask 130112
    %v199 = vsel %vm198, %v197, %v192
    %v200 = vlaneseq
    %v201 = vshrl.u32 %v200, 7
    %v202 = vsub.s32 %v188, %v201
    %v203 = vrot.slane %v180, %v202
    %v204 = vlaneseq
    %v205 = vshrl.u32 %v204, 7
    %v206 = vsub.s32 %v193, %v205
    %v207 = vrot.slane %v182, %v206
    %v208 = vsel %vm198, %v207, %v203
    %vm209 = vcmask 1041409
    %v210 = vsel %vm209, %v208, %v199
    %v212 = vmul.f32 %v47, %v210
    %v213 = vadd.f32 %v212, %v48
    %vm214 = vcmask 123904
    %v215 = vsel %vm214, %v213, -inf
    %216 = vmax.xlane.f32.xlu0 %v215
    %v217 = vpop.xlane.xlu0 %216
    %v218 = vsub.f32 %v213, %v217
    %v219 = vmul.f32 %v218, 1.442695
    %v220 = vpow.pop %v219
    %v221 = vsel %vm214, %v220, 0.0
    %222 = vadd.xlane.f32.xlu0 %v221
    %v223 = vpop.xlane.xlu0 %222
    %v224 = vlog2.pop %v223
    %v225 = vmul.f32 %v224, 0.6931472
    %v226 = vadd.f32 %v217, %v225
    %227 = vst [vmem:[#allocation7] sm:$0x3] %v226
    // Predicated region
    $region30: #{tpu_custom_call.1} parent=1 // pred_check
      _
    $region31: #{tpu_custom_call.1} parent=1 // pred_check_branch
      %229 = sbr.rel (0) target = $region33
    $region32: #{tpu_custom_call.1} parent=1 // pred_region
      %s231 = ssub.s32 32, 32
      %232 = vsyncadd [#allocation4], %s231
      %s234 = sshll.u32 [#allocation7], 4
      %s235 = int_to_ptr.vmem [resolvable:$true] %s234
      %237 = dma.vmem_to_hbm [thread:$0]  %s235, 32, %s5, [#allocation4]
    $region33: #{tpu_custom_call.1} parent=1 // pred_fallthru
      _
    // Predicated region
    $region34: #{tpu_custom_call.1} parent=1 // pred_check
      _
    $region35: #{tpu_custom_call.1} parent=1 // pred_check_branch
      %239 = sbr.rel (0) target = $region37
    $region36: #{tpu_custom_call.1} parent=1 // pred_region
      %240 = dma.done [#allocation4], 32
    $region37: #{tpu_custom_call.1} parent=1 // pred_fallthru
      _
    %241 = vsyncpa [#allocation3], 1
    %242 = vsyncpa [#allocation6], 1
    %243 = vsyncpa [#allocation4], 1

</llo_original>
